<compile_context>
chip_gen: v7x
topology: tpu7x:2x2x1
jax: 0.10.0
libtpu: 0.0.40
codegen_flags: <defaults>
</compile_context>

<pallas_src>
import jax
import jax.numpy as jnp
from jax import lax
from jax.experimental import pallas as pl
from jax.experimental.pallas import tpu as pltpu


def _round_up(x: int, m: int) -> int:
    return (x + m - 1) // m * m


def _glm_kernel(x_ref, a_t_ref, o_ref):
    """One M-tile: o = (X_tile @ A_full)^T computed as A_full^T <contract> X_tile.

    a_t_ref: (n_classes, n_cov)   -- tiny, resident
    x_ref:   (tile_m,    n_cov)   -- streamed
    o_ref:   (n_classes, tile_m)  -- lane-dense (last dim multiple of 128)
    """
    o_ref[...] = lax.dot_general(
        a_t_ref[...],
        x_ref[...],
        dimension_numbers=(((1,), (1,)), ((), ())),
        preferred_element_type=jnp.float32,
    ).astype(o_ref.dtype)


def multinomial_glm_forward(x, a_param, *, tile_m=4096, return_transposed=False):
    """Forward pass of MultinomialGLM: logits = X @ concat([A, zeros], axis=1).

    x:       (n_samples, n_covariates)
    a_param: (n_covariates, n_classes - 1)  -- the nn.Parameter A
    returns: (n_samples, n_classes) float32 logits
             (or (n_classes, n_samples) if return_transposed=True).
    """
    # TPU kernel computes in float32 (module uses float64).
    x = jnp.asarray(x, dtype=jnp.float32)
    a_param = jnp.asarray(a_param, dtype=jnp.float32)

    n_samples, n_cov = x.shape
    n_classes = a_param.shape[1] + 1

    # get_full_A(): [A | constant zero column]; pre-transpose the tiny matrix
    # (n_classes x n_cov) so the kernel output block is lane-dense.
    constant_column = jnp.zeros((n_cov, 1), dtype=a_param.dtype)
    a_t = jnp.concatenate([a_param, constant_column], axis=1).T  # (n_classes, n_cov)

    # ---- M-tile selection (mem-bound => as large as sensible) --------------
    tile_m = _round_up(max(128, min(int(tile_m), 8192)), 128)
    tile_m = min(tile_m, _round_up(n_samples, 128))
    # Keep at least two grid steps when there is enough work so the "parallel"
    # M axis can be sharded across the two TensorCores on v7x.
    if pl.cdiv(n_samples, tile_m) < 2 and n_samples > 128:
        tile_m = _round_up(pl.cdiv(n_samples, 2), 128)

    grid_m = pl.cdiv(n_samples, tile_m)
    m_pad = grid_m * tile_m
    if m_pad != n_samples:
        # Zero rows contribute zero logits; sliced away below.
        x = jnp.pad(x, ((0, m_pad - n_samples), (0, 0)))

    # ---- VMEM budget: lane-padded block footprint, double-buffered ---------
    itemsize = 4
    x_blk = tile_m * _round_up(n_cov, 128) * itemsize          # X pads lanes -> 128
    o_blk = _round_up(n_classes, 8) * tile_m * itemsize
    a_blk = _round_up(n_classes, 8) * _round_up(n_cov, 128) * itemsize
    vmem_est = 2 * (x_blk + o_blk + a_blk)                     # double-buffered
    vmem_limit = int(min(max(2 * vmem_est, 16 * 2**20), 32 * 2**20))

    cost = pl.CostEstimate(
        flops=2 * m_pad * n_cov * n_classes,
        transcendentals=0,
        bytes_accessed=itemsize * (m_pad * n_cov + m_pad * n_classes
                                   + n_cov * n_classes),
    )

    out_t = pl.pallas_call(
        _glm_kernel,
        out_shape=jax.ShapeDtypeStruct((n_classes, m_pad), jnp.float32),
        grid_spec=pltpu.PrefetchScalarGridSpec(
            num_scalar_prefetch=0,
            grid=(grid_m,),
            in_specs=[
                # X tile: (tile_m, n_cov); n_cov is the full array extent.
                pl.BlockSpec((tile_m, n_cov), lambda i: (i, 0)),
                # A^T is tiny; constant block index => fetched once, not
                # re-DMA'd every grid step.
                pl.BlockSpec((n_classes, n_cov), lambda i: (0, 0)),
            ],
            # Lane-dense output: last dim = tile_m (multiple of 128).
            out_specs=pl.BlockSpec((n_classes, tile_m), lambda i: (0, i)),
        ),
        compiler_params=pltpu.CompilerParams(
            dimension_semantics=("parallel",),
            vmem_limit_bytes=vmem_limit,
        ),
        cost_estimate=cost,
    )(x, a_t)

    out_t = out_t[:, :n_samples]
    if return_transposed:
        return out_t                       # (n_classes, n_samples)
    return out_t.T                         # (n_samples, n_classes), module layout


if __name__ == "__main__":
    key = jax.random.PRNGKey(0)
    kx, ka, kx2 = jax.random.split(key, 3)

    def _reference(x, a_param):
        n_cov = x.shape[1]
        a_full = jnp.concatenate(
            [a_param, jnp.zeros((n_cov, 1), dtype=a_param.dtype)], axis=1)
        return x @ a_full

    # Shapes consistent with the module's forward: X (n_samples, n_covariates),
    # A (n_covariates, n_classes - 1).  Ragged n_samples exercises the
    # pl.cdiv + padding path and a 2-step grid.
    n_samples, n_covariates, n_classes = 500, 32, 8
    x = jax.random.normal(kx, (n_samples, n_covariates), dtype=jnp.float32)
    # The module's __init__ zeros A; use deterministic random values so the
    # matmul result is non-trivial.
    a_param = 0.1 * jax.random.normal(
        ka, (n_covariates, n_classes - 1), dtype=jnp.float32)

    logits = jax.block_until_ready(multinomial_glm_forward(x, a_param))
    ref = _reference(x, a_param)
    assert logits.shape == (n_samples, n_classes)
    assert jnp.allclose(logits, ref, atol=1e-5, rtol=1e-5), "mismatch vs reference"
    # Last column is the constant (zero) column's contribution: exactly zero.
    assert jnp.allclose(logits[:, -1], 0.0, atol=1e-6)

    # Transposed (lane-dense) output path.
    logits_t = jax.block_until_ready(
        multinomial_glm_forward(x, a_param, return_transposed=True))
    assert logits_t.shape == (n_classes, n_samples)
    assert jnp.allclose(logits_t.T, ref, atol=1e-5, rtol=1e-5)

    # Tiny case: single 128-row tile with heavy padding.
    x_small = jax.random.normal(kx2, (64, n_covariates), dtype=jnp.float32)
    logits_small = jax.block_until_ready(
        multinomial_glm_forward(x_small, a_param))
    assert logits_small.shape == (64, n_classes)
    assert jnp.allclose(logits_small, _reference(x_small, a_param),
                        atol=1e-5, rtol=1e-5), "mismatch vs reference (small)"

    print("KERNEL_OK")
</pallas_src>

<mosaic_0001>
module attributes {stable_mosaic.version = 11 : i64} {
  func.func @_glm_kernel(%arg0: i32, %arg1: memref<256x32xf32, #tpu.memory_space<vmem>>, %arg2: memref<8x32xf32, #tpu.memory_space<vmem>>, %arg3: memref<8x256xf32, #tpu.memory_space<vmem>>) attributes {dimension_semantics = [#tpu.dimension_semantics<parallel>], iteration_bounds = array<i64: 2>, scalar_prefetch = 0 : i64, scratch_operands = 0 : i64, tpu.core_type = #tpu.core_type<tc>, window_params = [{transform_indices = @transform_0, window_bounds = array<i64: 256, 32>}, {pipeline_mode = #tpu.pipeline_mode<synchronous>, transform_indices = @transform_1, window_bounds = array<i64: 8, 32>}, {transform_indices = @transform_2, window_bounds = array<i64: 8, 256>}]} {
    %c0 = arith.constant 0 : index
    %c0_0 = arith.constant 0 : index
    %0 = vector.load %arg2[%c0, %c0_0] : memref<8x32xf32, #tpu.memory_space<vmem>>, vector<8x32xf32>
    %c0_1 = arith.constant 0 : index
    %c0_2 = arith.constant 0 : index
    %1 = vector.load %arg1[%c0_1, %c0_2] : memref<256x32xf32, #tpu.memory_space<vmem>>, vector<256x32xf32>
    %cst = arith.constant dense<0.000000e+00> : vector<8x256xf32>
    %2 = tpu.matmul %0, %1, %cst {dimension_numbers = #tpu.dot_dimension_numbers<[1], [1], [0], [0], [0, 0, 1, 0], [], []>} : vector<8x32xf32>, vector<256x32xf32>, vector<8x256xf32> -> vector<8x256xf32>
    %c0_3 = arith.constant 0 : index
    %c0_4 = arith.constant 0 : index
    %3 = vector.load %arg3[%c0_3, %c0_4] : memref<8x256xf32, #tpu.memory_space<vmem>>, vector<8x256xf32>
    tpu.vector_store %arg3[%c0_3, %c0_4], %2 {strides = array<i32>} : memref<8x256xf32, #tpu.memory_space<vmem>>, vector<8x256xf32>,
    return
  }
  func.func @transform_0(%arg0: i32) -> (i32, i32) {
    %c0_i32 = arith.constant 0 : i32
    %c0_i32_0 = arith.constant 0 : i32
    return %arg0, %c0_i32 : i32, i32
  }
  func.func @transform_1(%arg0: i32) -> (i32, i32) {
    %c0_i32 = arith.constant 0 : i32
    %c0_i32_0 = arith.constant 0 : i32
    %c0_i32_1 = arith.constant 0 : i32
    return %c0_i32, %c0_i32_0 : i32, i32
  }
  func.func @transform_2(%arg0: i32) -> (i32, i32) {
    %c0_i32 = arith.constant 0 : i32
    %c0_i32_0 = arith.constant 0 : i32
    return %c0_i32, %arg0 : i32, i32
  }
}

</mosaic_0001>

<llo_original>
// kernel: tpu_custom_call.1
$region0: #{tpu_custom_call.1}
  #allocation0 [shape = 'u32[]', space=smem, size = 0x4, offset = 0x4, fixed_abs, tag = 'smem constant byte address 0x4 - core index']
  #allocation1 [shape = 'u32[144,128]{1,0:T(1,128)}', space=vmem, size = 0x12000, scoped, tag = 'internal scratch']
  %s0 = inlined_call_operand.vmem [shape: f32[512,32], index: 0, kind: input, shape index: {}]
  %s1 = inlined_call_operand.vmem [shape: f32[8,32], index: 1, kind: input, shape index: {}]
  %s2 = inlined_call_operand.hbm [shape: f32[8,512], index: 2, kind: output, shape index: {}]
  %s3 = sld [smem:[#allocation0]]
  $region41: #{tpu_custom_call.1} parent=0
    _
  %s5 = ssub.s32 1, %s3
  %s6 = scalar_select 0, %s5, %s3
  $region1: #{tpu_custom_call.1} parent=0
    #allocation2 [shape = 'u8[16384]{0}', space=vmem, size = 0x4000, scoped, tag = 'output window, operand 0']
    #allocation3 [shape = 's32[2]{0}', space=sflag, size = 0x8, scoped, tag = 'scoped memory for tpu_custom_call.1']
    %7 = vsyncpa [#allocation3], 0
    %s8 = scalar_lea.sflag [#allocation3], 1
    %9 = vsyncpa %s8, 0
    loop: start=0, step=1, limit=4
    $region2: #{tpu_custom_call.1} parent=1 // loop_pre_header
      _
    $region3: #{tpu_custom_call.1} parent=1 // loop_header
      %s11 = sphi 0, %s15
      %p12 = scmp.ge.s32.totalorder %s11, 4
      %s21 = sphi 0, %s23
      %s24 = sphi 0, %s21
      %s25 = sphi 0, %s24
      %s41 = sphi 0, %s25
      %s45 = sphi 0, %s45
      %s47 = sphi 0, %s45
      %s48 = sphi 0, %s47
      %s62 = sphi 0, %s48
      %s68 = sphi 0, %s70
      %s71 = sphi 0, %s68
      %s72 = sphi 0, %s71
      %s88 = sphi 0, %s72
    $region4: #{tpu_custom_call.1} parent=1 // loop_header_branch
      %14 = sbr.rel (%p12) target = $region8
    $region5: #{tpu_custom_call.1} parent=1 // loop_body
      %s16 = ssub.s32 %s11, 1
      %s17 = ssub.s32 %s11, 2
      %s18 = sadd.s32 %s11, 1
      %s19 = ssub.s32 %s11, %s18
      %p20 = scmp.eq.s32.totalorder %s19, 0
      %s22 = sadd.s32 %s21, 1
      %s23 = scalar_select %p20, %s21, %s22
      %p26 = pneg %p20
      %p27 = scmp.eq.s32.totalorder %s11, 1
      %p28 = por %p26, %p27
      %p29 = scmp.ne.s32.totalorder %s21, %s24
      %p30 = scmp.eq.s32.totalorder %s11, 0
      %p31 = por %p29, %p30
      %p32 = scmp.ne.s32.totalorder %s21, %s24
      %p33 = scmp.eq.s32.totalorder %s16, 1
      %p34 = por %p32, %p33
      %p35 = scmp.ne.s32.totalorder %s24, %s25
      %p36 = scmp.eq.s32.totalorder %s16, 0
      %p37 = por %p35, %p36
      %p38 = scmp.ne.s32.totalorder %s24, %s25
      %p39 = scmp.eq.s32.totalorder %s17, 1
      %p40 = por %p38, %p39
      %p42 = scmp.ne.s32.totalorder %s25, %s41
      %p43 = scmp.eq.s32.totalorder %s17, 0
      %p44 = por %p42, %p43
      %s46 = sadd.s32 %s45, 1
      %p49 = scmp.eq.s32.totalorder %s11, 1
      %p50 = scmp.ne.s32.totalorder %s45, %s47
      %p51 = scmp.eq.s32.totalorder %s11, 0
      %p52 = por %p50, %p51
      %p53 = scmp.ne.s32.totalorder %s45, %s47
      %p54 = scmp.eq.s32.totalorder %s16, 1
      %p55 = por %p53, %p54
      %p56 = scmp.ne.s32.totalorder %s47, %s48
      %p57 = scmp.eq.s32.totalorder %s16, 0
      %p58 = por %p56, %p57
      %p59 = scmp.ne.s32.totalorder %s47, %s48
      %p60 = scmp.eq.s32.totalorder %s17, 1
      %p61 = por %p59, %p60
      %p63 = scmp.ne.s32.totalorder %s48, %s62
      %p64 = scmp.eq.s32.totalorder %s17, 0
      %p65 = por %p63, %p64
      %s66 = ssub.s32 %s11, %s18
      %p67 = scmp.eq.s32.totalorder %s66, 0
      %s69 = sadd.s32 %s68, 1
      %s70 = scalar_select %p67, %s68, %s69
      %p73 = pneg %p67
      %p74 = scmp.eq.s32.totalorder %s11, 1
      %p75 = por %p73, %p74
      %p76 = scmp.ne.s32.totalorder %s68, %s71
      %p77 = scmp.eq.s32.totalorder %s11, 0
      %p78 = por %p76, %p77
      %p79 = scmp.ne.s32.totalorder %s68, %s71
      %p80 = scmp.eq.s32.totalorder %s16, 1
      %p81 = por %p79, %p80
      %p82 = scmp.ne.s32.totalorder %s71, %s72
      %p83 = scmp.eq.s32.totalorder %s16, 0
      %p84 = por %p82, %p83
      %p85 = scmp.ne.s32.totalorder %s71, %s72
      %p86 = scmp.eq.s32.totalorder %s17, 1
      %p87 = por %p85, %p86
      %p89 = scmp.ne.s32.totalorder %s72, %s88
      %p90 = scmp.eq.s32.totalorder %s17, 0
      %p91 = por %p89, %p90
      %p92 = scmp.le.s32.totalorder 1, %s11
      %p93 = scmp.lt.s32.totalorder %s11, 3
      %p94 = pnand %p92, %p93
      %p95 = pneg %p94
      // Predicated region
      $region9: #{tpu_custom_call.1} parent=5 // pred_check
        _
      $region10: #{tpu_custom_call.1} parent=5 // pred_check_branch
        %97 = sbr.rel (%p94) target = $region12
      $region11: #{tpu_custom_call.1} parent=5 // pred_region
        %s98 = ssub.s32 %s11, 1
        // Predicated region
        $region13: #{tpu_custom_call.1} parent=11 // pred_check
          %p99 = pneg %p58
        $region14: #{tpu_custom_call.1} parent=11 // pred_check_branch
          %101 = sbr.rel (%p99) target = $region16
        $region15: #{tpu_custom_call.1} parent=11 // pred_region
          _
        $region16: #{tpu_custom_call.1} parent=11 // pred_fallthru
          _
      $region12: #{tpu_custom_call.1} parent=5 // pred_fallthru
        _
      %p102 = scmp.lt.s32.totalorder %s11, 2
      // Predicated region
      $region17: #{tpu_custom_call.1} parent=5 // pred_check
        %p103 = pneg %p102
      $region18: #{tpu_custom_call.1} parent=5 // pred_check_branch
        %105 = sbr.rel (%p103) target = $region20
      $region19: #{tpu_custom_call.1} parent=5 // pred_region
        // Predicated region
        $region21: #{tpu_custom_call.1} parent=19 // pred_check
          %p106 = pneg %p31
        $region22: #{tpu_custom_call.1} parent=19 // pred_check_branch
          %108 = sbr.rel (%p106) target = $region24
        $region23: #{tpu_custom_call.1} parent=19 // pred_region
          %s109 = smul.u32 32, %s11
          %p110 = scmp.lt.s32.totalorder %s109, 63
          %s111 = scalar_select %p110, %s109, 63
          %s112 = smul.addr %s111, 8
          %s113 = scalar_lea.vmem %s0, %s112
          %s114 = smul.u32 32, %s11
        $region24: #{tpu_custom_call.1} parent=19 // pred_fallthru
          _
      $region20: #{tpu_custom_call.1} parent=5 // pred_fallthru
        _
      %p115 = scmp.le.s32.totalorder 1, %s11
      %p116 = scmp.lt.s32.totalorder %s11, 3
      %p117 = pnand %p115, %p116
      %p118 = pneg %p117
      // Predicated region
      $region25: #{tpu_custom_call.1} parent=5 // pred_check
        _
      $region26: #{tpu_custom_call.1} parent=5 // pred_check_branch
        %120 = sbr.rel (%p117) target = $region28
      $region27: #{tpu_custom_call.1} parent=5 // pred_region
        %s121 = ssub.s32 %s11, 1
        %s122 = smul.u32 32, %s16
        %p123 = scmp.lt.s32.totalorder %s122, 63
        %s124 = scalar_select %p123, %s122, 63
        %s125 = smul.addr %s124, 8
        %s126 = scalar_lea.vmem %s0, %s125
        %p127 = pneg %p37
        %p128 = pneg %p34
        %p129 = pneg %p58
        %p130 = pneg %p55
        %p131 = pneg %p84
        %p132 = pneg %p81
        %s133 = sand.u32 %s71, 1
        %s134 = scalar_lea.sflag [#allocation3], %s133
        %s135 = sand.u32 %s71, 1
        %s136 = smul.addr %s135, 16
        %s137 = scalar_lea.vmem [#allocation2], %s136
        %s138 = smul.u32 32, %s16
        %p139 = scmp.lt.s32.totalorder %s138, 63
        %s140 = scalar_select %p139, %s138, 63
        %s141 = smul.addr %s140, 8
        %s142 = scalar_lea.vmem %s0, %s141
        %s143 = smul.u32 32, %s16
        %s144 = smul.u32 2, %s16
        %v145 = vld [vmem:[%s1] sm:$0xff]
        %v146 = vld [vmem:[%s142] sm:$0xff]
        %v147 = vld [vmem:[%s142 + $0x8] sm:$0xff]
        %v148 = vld [vmem:[%s142 + $0x10] sm:$0xff]
        %v149 = vld [vmem:[%s142 + $0x18] sm:$0xff]
        %v150 = vld [vmem:[%s142 + $0x20] sm:$0xff]
        %v151 = vld [vmem:[%s142 + $0x28] sm:$0xff]
        %v152 = vld [vmem:[%s142 + $0x30] sm:$0xff]
        %v153 = vld [vmem:[%s142 + $0x38] sm:$0xff]
        %v154 = vld [vmem:[%s142 + $0x40] sm:$0xff]
        %v155 = vld [vmem:[%s142 + $0x48] sm:$0xff]
        %v156 = vld [vmem:[%s142 + $0x50] sm:$0xff]
        %v157 = vld [vmem:[%s142 + $0x58] sm:$0xff]
        %v158 = vld [vmem:[%s142 + $0x60] sm:$0xff]
        %v159 = vld [vmem:[%s142 + $0x68] sm:$0xff]
        %v160 = vld [vmem:[%s142 + $0x70] sm:$0xff]
        %v161 = vld [vmem:[%s142 + $0x78] sm:$0xff]
        %v162 = vld [vmem:[%s142 + $0x80] sm:$0xff]
        %v163 = vld [vmem:[%s142 + $0x88] sm:$0xff]
        %v164 = vld [vmem:[%s142 + $0x90] sm:$0xff]
        %v165 = vld [vmem:[%s142 + $0x98] sm:$0xff]
        %v166 = vld [vmem:[%s142 + $0xa0] sm:$0xff]
        %v167 = vld [vmem:[%s142 + $0xa8] sm:$0xff]
        %v168 = vld [vmem:[%s142 + $0xb0] sm:$0xff]
        %v169 = vld [vmem:[%s142 + $0xb8] sm:$0xff]
        %v170 = vld [vmem:[%s142 + $0xc0] sm:$0xff]
        %v171 = vld [vmem:[%s142 + $0xc8] sm:$0xff]
        %v172 = vld [vmem:[%s142 + $0xd0] sm:$0xff]
        %v173 = vld [vmem:[%s142 + $0xd8] sm:$0xff]
        %v174 = vld [vmem:[%s142 + $0xe0] sm:$0xff]
        %v175 = vld [vmem:[%s142 + $0xe8] sm:$0xff]
        %v176 = vld [vmem:[%s142 + $0xf0] sm:$0xff]
        %v177 = vld [vmem:[%s142 + $0xf8] sm:$0xff]
        %vm178 = vcmask 261120
        %v180 = vsel %vm178, %v145, 0
        %v183 = vsel %vm178, %v146, 0
        %v186 = vsel %vm178, %v147, 0
        %v189 = vsel %vm178, %v148, 0
        %v192 = vsel %vm178, %v149, 0
        %v195 = vsel %vm178, %v150, 0
        %v198 = vsel %vm178, %v151, 0
        %v201 = vsel %vm178, %v152, 0
        %v204 = vsel %vm178, %v153, 0
        %v207 = vsel %vm178, %v154, 0
        %v210 = vsel %vm178, %v155, 0
        %v213 = vsel %vm178, %v156, 0
        %v216 = vsel %vm178, %v157, 0
        %v219 = vsel %vm178, %v158, 0
        %v222 = vsel %vm178, %v159, 0
        %v225 = vsel %vm178, %v160, 0
        %v228 = vsel %vm178, %v161, 0
        %v231 = vsel %vm178, %v162, 0
        %v234 = vsel %vm178, %v163, 0
        %v237 = vsel %vm178, %v164, 0
        %v240 = vsel %vm178, %v165, 0
        %v243 = vsel %vm178, %v166, 0
        %v246 = vsel %vm178, %v167, 0
        %v249 = vsel %vm178, %v168, 0
        %v252 = vsel %vm178, %v169, 0
        %v255 = vsel %vm178, %v170, 0
        %v258 = vsel %vm178, %v171, 0
        %v261 = vsel %vm178, %v172, 0
        %v264 = vsel %vm178, %v173, 0
        %v267 = vsel %vm178, %v174, 0
        %v270 = vsel %vm178, %v175, 0
        %v273 = vsel %vm178, %v176, 0
        %v276 = vsel %vm178, %v177, 0
        %278 = vmatprep.subr.mxu0 0.0
        %279 = vmatpush1.xpose.msra.mxu0 %v183
        %280 = vmatprep.subr.mxu0 0.0
        %281 = vmatpush1.xpose.msra.mxu0 %v186
        %282 = vmatprep.subr.mxu0 0.0
        %283 = vmatpush1.xpose.msra.mxu0 %v189
        %284 = vmatprep.subr.mxu0 0.0
        %285 = vmatpush1.xpose.msra.mxu0 %v192
        %286 = vmatprep.subr.mxu0 0.0
        %287 = vmatpush1.xpose.msra.mxu0 %v195
        %288 = vmatprep.subr.mxu0 0.0
        %289 = vmatpush1.xpose.msra.mxu0 %v198
        %290 = vmatprep.subr.mxu0 0.0
        %291 = vmatpush1.xpose.msra.mxu0 %v201
        %292 = vmatprep.subr.mxu0 0.0
        %293 = vmatpush1.xpose.msra.mxu0 %v204
        %294 = vmatprep.subr.mxu0 0.0
        %295 = vmatpush1.xpose.msra.mxu0 %v207
        %296 = vmatprep.subr.mxu0 0.0
        %297 = vmatpush1.xpose.msra.mxu0 %v210
        %298 = vmatprep.subr.mxu0 0.0
        %299 = vmatpush1.xpose.msra.mxu0 %v213
        %300 = vmatprep.subr.mxu0 0.0
        %301 = vmatpush1.xpose.msra.mxu0 %v216
        %302 = vmatprep.subr.mxu0 0.0
        %303 = vmatpush1.xpose.msra.mxu0 %v219
        %304 = vmatprep.subr.mxu0 0.0
        %305 = vmatpush1.xpose.msra.mxu0 %v222
        %306 = vmatprep.subr.mxu0 0.0
        %307 = vmatpush1.xpose.msra.mxu0 %v225
        %308 = vmatprep.subr.mxu0 0.0
        %309 = vmatpush1.xpose.msra.mxu0 %v228
        %310 = vmatprep.subr.mxu0 0.0
        %311 = vmatpush1.xpose.msra.mxu0 %v231
        %312 = vmatprep.subr.mxu0 0.0
        %313 = vmatpush1.xpose.msra.mxu0 %v234
        %314 = vmatprep.subr.mxu0 0.0
        %315 = vmatpush1.xpose.msra.mxu0 %v237
        %316 = vmatprep.subr.mxu0 0.0
        %317 = vmatpush1.xpose.msra.mxu0 %v240
        %318 = vmatprep.subr.mxu0 0.0
        %319 = vmatpush1.xpose.msra.mxu0 %v243
        %320 = vmatprep.subr.mxu0 0.0
        %321 = vmatpush1.xpose.msra.mxu0 %v246
        %322 = vmatprep.subr.mxu0 0.0
        %323 = vmatpush1.xpose.msra.mxu0 %v249
        %324 = vmatprep.subr.mxu0 0.0
        %325 = vmatpush1.xpose.msra.mxu0 %v252
        %326 = vmatprep.subr.mxu0 0.0
        %327 = vmatpush1.xpose.msra.mxu0 %v255
        %328 = vmatprep.subr.mxu0 0.0
        %329 = vmatpush1.xpose.msra.mxu0 %v258
        %330 = vmatprep.subr.mxu0 0.0
        %331 = vmatpush1.xpose.msra.mxu0 %v261
        %332 = vmatprep.subr.mxu0 0.0
        %333 = vmatpush1.xpose.msra.mxu0 %v264
        %334 = vmatprep.subr.mxu0 0.0
        %335 = vmatpush1.xpose.msra.mxu0 %v267
        %336 = vmatprep.subr.mxu0 0.0
        %337 = vmatpush1.xpose.msra.mxu0 %v270
        %338 = vmatprep.subr.mxu0 0.0
        %339 = vmatpush1.xpose.msra.mxu0 %v273
        %340 = vmatprep.subr.mxu0 0.0
        %341 = vmatpush1.xpose.msra.mxu0 %v276
        %342 = vmatprep.mubr.f32.mxu0 0.0
        %343 = vmatmul.mubr.f32.gmra.mrb[0].mxu0 %v180
        %v344 = vpop.f32.mrb[0].mxu0
        %v345 = vadd.f32 0.0, %v344
        %v346 = vpop.f32.mrb[0].mxu0
        %v347 = vadd.f32 0.0, %v346
        %348 = vdwg.mxu0
        %349 = vst [vmem:[%s137] sm:$0xff] %v345
        %350 = vst [vmem:[%s137 + $0x8] sm:$0xff] %v347
        %s351 = sand.u32 %s71, 1
        %s352 = scalar_lea.sflag [#allocation3], %s351
        %s353 = sand.u32 %s71, 1
        %s354 = smul.addr %s353, 16
        %s355 = scalar_lea.vmem [#allocation2], %s354
        // Predicated region
        $region29: #{tpu_custom_call.1} parent=27 // pred_check
          %p356 = pneg %p81
        $region30: #{tpu_custom_call.1} parent=27 // pred_check_branch
          %358 = sbr.rel (%p356) target = $region32
        $region31: #{tpu_custom_call.1} parent=27 // pred_region
          %s359 = smul.u32 2, %s16
          %s361 = ssub.s32 256, 256
          %362 = vsyncadd %s352, %s361
          %s363 = smul.addr %s359, 128
          %s364 = scalar_lea.hbm %s2, %s363
          %s366 = sshll.u32 %s355, 4
          %s367 = int_to_ptr.vmem [resolvable:$true] %s366
          %369 = dma.vmem_to_hbm [thread:$0]  %s367, 256, %s364, %s352
        $region32: #{tpu_custom_call.1} parent=27 // pred_fallthru
          _
      $region28: #{tpu_custom_call.1} parent=5 // pred_fallthru
        _
      %p370 = scmp.le.s32.totalorder 2, %s11
      // Predicated region
      $region33: #{tpu_custom_call.1} parent=5 // pred_check
        %p371 = pneg %p370
      $region34: #{tpu_custom_call.1} parent=5 // pred_check_branch
        %373 = sbr.rel (%p371) target = $region36
      $region35: #{tpu_custom_call.1} parent=5 // pred_region
        %s374 = ssub.s32 %s11, 2
        // Predicated region
        $region37: #{tpu_custom_call.1} parent=35 // pred_check
          %p375 = pneg %p87
        $region38: #{tpu_custom_call.1} parent=35 // pred_check_branch
          %377 = sbr.rel (%p375) target = $region40
        $region39: #{tpu_custom_call.1} parent=35 // pred_region
          %s378 = sand.u32 %s72, 1
          %s379 = scalar_lea.sflag [#allocation3], %s378
          %s380 = sand.u32 %s72, 1
          %s381 = smul.addr %s380, 16
          %s382 = scalar_lea.vmem [#allocation2], %s381
          %383 = dma.done %s379, 256
        $region40: #{tpu_custom_call.1} parent=35 // pred_fallthru
          _
      $region36: #{tpu_custom_call.1} parent=5 // pred_fallthru
        _
    $region6: #{tpu_custom_call.1} parent=1 // loop_footer
      %s15 = sadd.s32 1, %s11
    $region7: #{tpu_custom_call.1} parent=1 // loop_footer_branch
      %10 = sbr.rel target = $region3
    $region8: #{tpu_custom_call.1} parent=1 // loop_exit
      _
    %384 = vsyncpa [#allocation3], 1
    %s385 = scalar_lea.sflag [#allocation3], 1
    %386 = vsyncpa %s385, 1

</llo_original>
